<compile_context>
chip_gen: v7x
topology: tpu7x:2x2x1
jax: 0.10.0
libtpu: 0.0.40
codegen_flags: <defaults>
</compile_context>

<pallas_src>
import functools

import jax
import jax.numpy as jnp
from jax.experimental import pallas as pl
from jax.experimental.pallas import tpu as pltpu

LANES = 128        # channel dims padded to a multiple of the 128-lane axis
SUBLANES = 8


def _round_up(a, m):
    return (a + m - 1) // m * m


# ---------------------------------------------------------------------------
# Kernel: one TemporalBlock (conv->relu->conv->relu -> +residual -> relu) for
# one (batch, time-tile) grid point.
# ---------------------------------------------------------------------------
def _temporal_block_kernel(x_cur_ref, x_halo_ref, w1_ref, b1_ref, w2_ref,
                           b2_ref, wd_ref, bd_ref, out_ref, xst_ref,
                           *, TL, pad, P8, dil, K, has_downsample):
    """Shapes (C* padded to a multiple of 128; H = 2*P8, P8 = round_up(pad,8)):

    x_cur_ref : (1, TL, Cin_p)     bf16  current time tile
    x_halo_ref: (1, H,  Cin_p)     bf16  last H rows of the previous tile
    w1_ref    : (K*Cin_p, Cout_p)  bf16  conv1 taps packed along contraction
    b1_ref    : (1, Cout_p)        f32
    w2_ref    : (K*Cout_p, Cout_p) bf16
    b2_ref    : (1, Cout_p)        f32
    wd_ref    : (Cin_p, Cout_p)    bf16  (tiny dummy if no downsample)
    bd_ref    : (1, Cout_p)        f32   (tiny dummy if no downsample)
    out_ref   : (1, TL, Cout_p)    bf16
    xst_ref   : (H + TL, Cin_p)    bf16  VMEM staging: halo + current tile
    """
    f32 = jnp.float32
    H = 2 * P8
    ext = TL + P8                       # conv1 computed on P8 extra (past) rows
    lt = pl.program_id(1)

    # ---- stage current tile + left halo (zeros at the sequence start) -----
    @pl.when(lt == 0)
    def _():
        xst_ref[0:H, :] = jnp.zeros((H, xst_ref.shape[1]), xst_ref.dtype)

    @pl.when(lt > 0)
    def _():
        xst_ref[0:H, :] = x_halo_ref[0]

    xst_ref[H:H + TL, :] = x_cur_ref[0]

    # ---- conv1: K dilation taps fused into one deep MXU matmul ------------
    taps1 = [xst_ref[P8 - pad + j * dil: P8 - pad + j * dil + ext, :]
             for j in range(K)]
    xcat = taps1[0] if K == 1 else jnp.concatenate(taps1, axis=-1)
    acc1 = jnp.dot(xcat, w1_ref[...], preferred_element_type=f32)
    h1 = jnp.maximum(acc1 + b1_ref[...], 0.0)
    # rows with a negative global time index are conv2's causal zero padding
    row_g = lt * TL - P8 + jax.lax.broadcasted_iota(jnp.int32, (ext, 1), 0)
    h1 = jnp.where(row_g >= 0, h1, 0.0).astype(x_cur_ref.dtype)
    # TODO(synk): dropout1/dropout2 are identity here (inference semantics).

    # ---- conv2: K dilation taps fused into one deep MXU matmul ------------
    taps2 = [h1[P8 - pad + j * dil: P8 - pad + j * dil + TL, :]
             for j in range(K)]
    hcat = taps2[0] if K == 1 else jnp.concatenate(taps2, axis=-1)
    acc2 = jnp.dot(hcat, w2_ref[...], preferred_element_type=f32)
    h2 = jnp.maximum(acc2 + b2_ref[...], 0.0)

    # ---- residual (+ optional 1x1 downsample) and final ReLU --------------
    if has_downsample:
        res = jnp.dot(x_cur_ref[0], wd_ref[...],
                      preferred_element_type=f32) + bd_ref[...]
    else:
        res = x_cur_ref[0].astype(f32)
    out_ref[0] = jnp.maximum(h2 + res, 0.0).astype(out_ref.dtype)


# ---------------------------------------------------------------------------
# One TemporalBlock layer (wrapper around a single pallas_call).
# ---------------------------------------------------------------------------
def temporal_block(x, w1, b1, w2, b2, wd, bd, dil, *, tl_base=128):
    """x: (N, L, Cin_p) bf16, channel-padded.  Weights in PyTorch Conv1d
    layout (Cout, Cin, K).  Returns (N, round_up(L, TL), Cout_p) bf16; extra
    trailing rows are harmless (causal convs never look ahead) and are sliced
    off at the network boundary."""
    N, L_in, cin_p = x.shape
    cout, cin, K = w1.shape
    assert cin <= cin_p
    cout_p = _round_up(cout, LANES)
    has_ds = wd is not None
    if not has_ds:
        assert cin == cout and cin_p == cout_p, "identity residual needs Cin==Cout"

    pad = (K - 1) * dil
    P8 = max(_round_up(pad, SUBLANES), SUBLANES)
    H = 2 * P8
    TL = _round_up(tl_base, H)
    TL = max(min(TL, _round_up(L_in, H)), H)        # don't over-pad tiny L
    Lp = _round_up(L_in, TL)
    if Lp != L_in:                                  # trailing (non-causal) pad
        x = jnp.pad(x, ((0, 0), (0, Lp - L_in), (0, 0)))
    n_lt = Lp // TL

    bf16 = jnp.bfloat16

    def pack_conv(w, cp_in):                        # (Cout,Cin,K)->(K*Cin_p,Cout_p)
        kk = w.shape[2]
        wt = jnp.transpose(w, (2, 1, 0))
        wt = jnp.pad(wt, ((0, 0), (0, cp_in - w.shape[1]),
                          (0, cout_p - w.shape[0])))
        return wt.reshape(kk * cp_in, cout_p).astype(bf16)

    w1p = pack_conv(w1, cin_p)
    w2p = pack_conv(w2, cout_p)
    b1p = jnp.pad(b1, (0, cout_p - cout)).reshape(1, cout_p).astype(jnp.float32)
    b2p = jnp.pad(b2, (0, cout_p - cout)).reshape(1, cout_p).astype(jnp.float32)
    if has_ds:
        wdp = jnp.pad(wd[:, :, 0].T, ((0, cin_p - cin),
                                      (0, cout_p - cout))).astype(bf16)
        bdp = jnp.pad(bd, (0, cout_p - cout)).reshape(1, cout_p).astype(jnp.float32)
    else:                                           # unused, keep the DMA tiny
        wdp = jnp.zeros((SUBLANES, LANES), bf16)
        bdp = jnp.zeros((1, LANES), jnp.float32)

    kernel = functools.partial(_temporal_block_kernel, TL=TL, pad=pad, P8=P8,
                               dil=dil, K=K, has_downsample=has_ds)

    flops = 2 * N * Lp * cout_p * (K * cin_p + K * cout_p
                                   + (cin_p if has_ds else 0))
    bytes_accessed = (N * (Lp + n_lt * H) * cin_p * 2      # x tile + halo reads
                      + N * Lp * cout_p * 2                # bf16 output write
                      + (w1p.size + w2p.size + wdp.size) * 2
                      + (b1p.size + b2p.size + bdp.size) * 4)

    return pl.pallas_call(
        kernel,
        out_shape=jax.ShapeDtypeStruct((N, Lp, cout_p), bf16),
        grid_spec=pltpu.PrefetchScalarGridSpec(
            num_scalar_prefetch=0,
            grid=(N, n_lt),
            in_specs=[
                pl.BlockSpec((1, TL, cin_p), lambda n, lt: (n, lt, 0)),
                pl.BlockSpec((1, H, cin_p),
                             lambda n, lt: (n, jnp.maximum(lt * (TL // H) - 1, 0), 0)),
                pl.BlockSpec(w1p.shape, lambda n, lt: (0, 0)),
                pl.BlockSpec(b1p.shape, lambda n, lt: (0, 0)),
                pl.BlockSpec(w2p.shape, lambda n, lt: (0, 0)),
                pl.BlockSpec(b2p.shape, lambda n, lt: (0, 0)),
                pl.BlockSpec(wdp.shape, lambda n, lt: (0, 0)),
                pl.BlockSpec(bdp.shape, lambda n, lt: (0, 0)),
            ],
            out_specs=pl.BlockSpec((1, TL, cout_p), lambda n, lt: (n, lt, 0)),
            scratch_shapes=[pltpu.VMEM((H + TL, cin_p), bf16)],
        ),
        compiler_params=pltpu.CompilerParams(
            dimension_semantics=("parallel", "parallel"),
            vmem_limit_bytes=32 * 1024 * 1024),
        cost_estimate=pl.CostEstimate(flops=int(flops), transcendentals=0,
                                      bytes_accessed=int(bytes_accessed)),
    )(x, x, w1p, b1p, w2p, b2p, wdp, bdp)


# ---------------------------------------------------------------------------
# Full TCN (PyTorch-compatible NCL boundary).
# ---------------------------------------------------------------------------
def temporal_conv_net(x_ncl, params, *, tl_base=128):
    """x_ncl: (N, C_in, L) f32 -> (N, C_last, L) f32.  Internally activations
    stay in bf16 NLC with channels padded to a multiple of 128."""
    N, C_in, L = x_ncl.shape
    cin_p = _round_up(C_in, LANES)
    x = jnp.transpose(x_ncl, (0, 2, 1)).astype(jnp.bfloat16)     # NCL -> NLC
    if cin_p != C_in:
        x = jnp.pad(x, ((0, 0), (0, 0), (0, cin_p - C_in)))
    for p in params:
        x = temporal_block(x, p["w1"], p["b1"], p["w2"], p["b2"],
                           p.get("wd"), p.get("bd"), p["dilation"],
                           tl_base=tl_base)
    c_last = params[-1]["w1"].shape[0]
    x = x[:, :L, :c_last].astype(jnp.float32)
    return jnp.transpose(x, (0, 2, 1))                           # NLC -> NCL


def init_params(key, num_inputs, num_channels, kernel_size=2):
    """Deterministic synthetic parameters in PyTorch Conv1d shapes."""
    params = []
    for i, out_ch in enumerate(num_channels):
        in_ch = num_inputs if i == 0 else num_channels[i - 1]
        dil = 2 ** i
        key, k1, k2, k3, k4, k5, k6 = jax.random.split(key, 7)
        s1 = 1.0 / (in_ch * kernel_size) ** 0.5
        s2 = 1.0 / (out_ch * kernel_size) ** 0.5
        p = {
            "dilation": dil,
            "w1": s1 * jax.random.normal(k1, (out_ch, in_ch, kernel_size), jnp.float32),
            "b1": 0.1 * jax.random.normal(k2, (out_ch,), jnp.float32),
            "w2": s2 * jax.random.normal(k3, (out_ch, out_ch, kernel_size), jnp.float32),
            "b2": 0.1 * jax.random.normal(k4, (out_ch,), jnp.float32),
        }
        if in_ch != out_ch:
            sd = 1.0 / in_ch ** 0.5
            p["wd"] = sd * jax.random.normal(k5, (out_ch, in_ch, 1), jnp.float32)
            p["bd"] = 0.1 * jax.random.normal(k6, (out_ch,), jnp.float32)
        params.append(p)
    return params


# ---------------- pure-JAX f32 reference (mirrors the PyTorch forward) ------
def _causal_conv1d_ref(x, w, b, dil):
    N, cin, L = x.shape
    cout, _, K = w.shape
    pad = (K - 1) * dil
    xp = jnp.pad(x, ((0, 0), (0, 0), (pad, 0)))
    out = jnp.broadcast_to(b[None, :, None], (N, cout, L))
    for j in range(K):
        out = out + jnp.einsum("oi,nil->nol", w[:, :, j],
                               xp[:, :, j * dil: j * dil + L])
    return out


def tcn_ref(x, params):
    for p in params:
        h = jax.nn.relu(_causal_conv1d_ref(x, p["w1"], p["b1"], p["dilation"]))
        h = jax.nn.relu(_causal_conv1d_ref(h, p["w2"], p["b2"], p["dilation"]))
        if "wd" in p:
            res = jnp.einsum("oi,nil->nol", p["wd"][:, :, 0], x) + p["bd"][None, :, None]
        else:
            res = x
        x = jax.nn.relu(h + res)
    return x


if __name__ == "__main__":
    key = jax.random.PRNGKey(0)
    kx, kp, kx2, kp2 = jax.random.split(key, 4)

    # ---- primary small test ------------------------------------------------
    N, C_in, L = 2, 4, 16
    num_channels = (8, 8, 16)                 # dilations 1, 2, 4
    x = jax.random.normal(kx, (N, C_in, L), jnp.float32)
    params = init_params(kp, C_in, num_channels, kernel_size=2)

    out = jax.block_until_ready(temporal_conv_net(x, params))
    ref = tcn_ref(x, params)
    assert out.shape == (N, num_channels[-1], L), out.shape
    if not jnp.allclose(out, ref, atol=6e-2, rtol=6e-2):
        err = float(jnp.max(jnp.abs(out - ref)))
        raise AssertionError(f"Pallas TCN mismatch vs reference (max abs err {err})")

    # ---- secondary test: multi-tile time axis, halo path, K=3, odd C_in ----
    N2, C2, L2 = 2, 3, 100
    ch2 = (8, 16)
    x2 = jax.random.normal(kx2, (N2, C2, L2), jnp.float32)
    params2 = init_params(kp2, C2, ch2, kernel_size=3)
    out2 = jax.block_until_ready(temporal_conv_net(x2, params2, tl_base=32))
    ref2 = tcn_ref(x2, params2)
    assert out2.shape == (N2, ch2[-1], L2), out2.shape
    if not jnp.allclose(out2, ref2, atol=6e-2, rtol=6e-2):
        err = float(jnp.max(jnp.abs(out2 - ref2)))
        raise AssertionError(f"Pallas tiled TCN mismatch vs reference (max abs err {err})")

    print("KERNEL_OK")
</pallas_src>

<mosaic_0001>
module attributes {stable_mosaic.version = 11 : i64} {
  func.func @_temporal_block_kernel(%arg0: i32, %arg1: i32, %arg2: memref<1x16x128xbf16, #tpu.memory_space<vmem>>, %arg3: memref<1x16x128xbf16, #tpu.memory_space<vmem>>, %arg4: memref<256x128xbf16, #tpu.memory_space<vmem>>, %arg5: memref<1x128xf32, #tpu.memory_space<vmem>>, %arg6: memref<256x128xbf16, #tpu.memory_space<vmem>>, %arg7: memref<1x128xf32, #tpu.memory_space<vmem>>, %arg8: memref<128x128xbf16, #tpu.memory_space<vmem>>, %arg9: memref<1x128xf32, #tpu.memory_space<vmem>>, %arg10: memref<1x16x128xbf16, #tpu.memory_space<vmem>>, %arg11: memref<32x128xbf16, #tpu.memory_space<vmem>>) attributes {dimension_semantics = [#tpu.dimension_semantics<parallel>, #tpu.dimension_semantics<parallel>], iteration_bounds = array<i64: 2, 1>, scalar_prefetch = 0 : i64, scratch_operands = 1 : i64, tpu.core_type = #tpu.core_type<tc>, window_params = [{transform_indices = @transform_0, window_bounds = array<i64: 1, 16, 128>}, {transform_indices = @transform_1, window_bounds = array<i64: 1, 16, 128>}, {pipeline_mode = #tpu.pipeline_mode<synchronous>, transform_indices = @transform_2, window_bounds = array<i64: 256, 128>}, {pipeline_mode = #tpu.pipeline_mode<synchronous>, transform_indices = @transform_3, window_bounds = array<i64: 1, 128>}, {pipeline_mode = #tpu.pipeline_mode<synchronous>, transform_indices = @transform_4, window_bounds = array<i64: 256, 128>}, {pipeline_mode = #tpu.pipeline_mode<synchronous>, transform_indices = @transform_5, window_bounds = array<i64: 1, 128>}, {pipeline_mode = #tpu.pipeline_mode<synchronous>, transform_indices = @transform_6, window_bounds = array<i64: 128, 128>}, {pipeline_mode = #tpu.pipeline_mode<synchronous>, transform_indices = @transform_7, window_bounds = array<i64: 1, 128>}, {transform_indices = @transform_8, window_bounds = array<i64: 1, 16, 128>}]} {
    %c0_i32 = arith.constant 0 : i32
    %0 = arith.cmpi eq, %arg1, %c0_i32 : i32
    %1 = arith.extui %0 : i1 to i32
    %c0_i32_0 = arith.constant 0 : i32
    %2 = arith.cmpi ne, %1, %c0_i32_0 : i32
    scf.if %2 {
      %cst_33 = arith.constant 0.000000e+00 : bf16
      %55 = vector.broadcast %cst_33 : bf16 to vector<16x128xbf16>
      %c0_34 = arith.constant 0 : index
      %c0_35 = arith.constant 0 : index
      %56 = vector.load %arg11[%c0_34, %c0_35] : memref<32x128xbf16, #tpu.memory_space<vmem>>, vector<16x128xbf16>
      tpu.vector_store %arg11[%c0_34, %c0_35], %55 {strides = array<i32>} : memref<32x128xbf16, #tpu.memory_space<vmem>>, vector<16x128xbf16>,
    } else {
    }
    %c0_i32_1 = arith.constant 0 : i32
    %3 = arith.cmpi sgt, %arg1, %c0_i32_1 : i32
    %4 = arith.extui %3 : i1 to i32
    %c0_i32_2 = arith.constant 0 : i32
    %5 = arith.cmpi ne, %4, %c0_i32_2 : i32
    scf.if %5 {
      %c0_33 = arith.constant 0 : index
      %c0_34 = arith.constant 0 : index
      %c0_35 = arith.constant 0 : index
      %55 = vector.load %arg3[%c0_33, %c0_34, %c0_35] : memref<1x16x128xbf16, #tpu.memory_space<vmem>>, vector<1x16x128xbf16>
      %56 = vector.shape_cast %55 : vector<1x16x128xbf16> to vector<16x128xbf16>
      %c0_36 = arith.constant 0 : index
      %c0_37 = arith.constant 0 : index
      %57 = vector.load %arg11[%c0_36, %c0_37] : memref<32x128xbf16, #tpu.memory_space<vmem>>, vector<16x128xbf16>
      tpu.vector_store %arg11[%c0_36, %c0_37], %56 {strides = array<i32>} : memref<32x128xbf16, #tpu.memory_space<vmem>>, vector<16x128xbf16>,
    } else {
    }
    %c0 = arith.constant 0 : index
    %c0_3 = arith.constant 0 : index
    %c0_4 = arith.constant 0 : index
    %6 = vector.load %arg2[%c0, %c0_3, %c0_4] : memref<1x16x128xbf16, #tpu.memory_space<vmem>>, vector<1x16x128xbf16>
    %7 = vector.shape_cast %6 : vector<1x16x128xbf16> to vector<16x128xbf16>
    %c16 = arith.constant 16 : index
    %c0_5 = arith.constant 0 : index
    %8 = vector.load %arg11[%c16, %c0_5] : memref<32x128xbf16, #tpu.memory_space<vmem>>, vector<16x128xbf16>
    tpu.vector_store %arg11[%c16, %c0_5], %7 {strides = array<i32>} : memref<32x128xbf16, #tpu.memory_space<vmem>>, vector<16x128xbf16>,
    %c7 = arith.constant 7 : index
    %c0_6 = arith.constant 0 : index
    %9 = vector.load %arg11[%c7, %c0_6] : memref<32x128xbf16, #tpu.memory_space<vmem>>, vector<24x128xbf16>
    %c8 = arith.constant 8 : index
    %c0_7 = arith.constant 0 : index
    %10 = vector.load %arg11[%c8, %c0_7] : memref<32x128xbf16, #tpu.memory_space<vmem>>, vector<24x128xbf16>
    %11 = tpu.concatenate %9, %10 in 1 : vector<24x128xbf16>, vector<24x128xbf16> -> vector<24x256xbf16>
    %c0_8 = arith.constant 0 : index
    %c0_9 = arith.constant 0 : index
    %12 = vector.load %arg4[%c0_8, %c0_9] : memref<256x128xbf16, #tpu.memory_space<vmem>>, vector<256x128xbf16>
    %cst = arith.constant dense<0.000000e+00> : vector<24x128xf32>
    %13 = tpu.matmul %11, %12, %cst {dimension_numbers = #tpu.dot_dimension_numbers<[1], [0], [0], [1], [0, 0, 1, 1], [], []>} : vector<24x256xbf16>, vector<256x128xbf16>, vector<24x128xf32> -> vector<24x128xf32>
    %c0_10 = arith.constant 0 : index
    %c0_11 = arith.constant 0 : index
    %14 = vector.load %arg5[%c0_10, %c0_11] : memref<1x128xf32, #tpu.memory_space<vmem>>, vector<1x128xf32>
    %15 = vector.broadcast %14 : vector<1x128xf32> to vector<24x128xf32>
    %16 = arith.addf %13, %15 : vector<24x128xf32>
    %cst_12 = arith.constant 0.000000e+00 : f32
    %17 = vector.broadcast %cst_12 : f32 to vector<24x128xf32>
    %18 = arith.maximumf %16, %17 : vector<24x128xf32>
    %c16_i32 = arith.constant 16 : i32
    %19 = arith.muli %arg1, %c16_i32 : i32
    %c8_i32 = arith.constant 8 : i32
    %20 = arith.subi %19, %c8_i32 : i32
    %21 = tpu.iota {dimensions = array<i32: 0>} : vector<24x1xi32>
    %22 = vector.broadcast %20 : i32 to vector<24x1xi32>
    %23 = arith.addi %22, %21 : vector<24x1xi32>
    %c0_i32_13 = arith.constant 0 : i32
    %24 = vector.broadcast %c0_i32_13 : i32 to vector<24x1xi32>
    %25 = arith.cmpi sge, %23, %24 : vector<24x1xi32>
    %cst_14 = arith.constant 0.000000e+00 : f32
    %26 = vector.shape_cast %25 : vector<24x1xi1> to vector<24x1xi1>
    %27 = vector.broadcast %26 : vector<24x1xi1> to vector<24x128xi1>
    %28 = vector.broadcast %cst_14 : f32 to vector<24x128xf32>
    %29 = arith.select %27, %18, %28 : vector<24x128xi1>, vector<24x128xf32>
    %30 = arith.truncf %29 : vector<24x128xf32> to vector<24x128xbf16>
    %31 = vector.extract_strided_slice %30 {offsets = [7, 0], sizes = [16, 128], strides = [1, 1]} : vector<24x128xbf16> to vector<16x128xbf16>
    %32 = vector.extract_strided_slice %30 {offsets = [8, 0], sizes = [16, 128], strides = [1, 1]} : vector<24x128xbf16> to vector<16x128xbf16>
    %33 = tpu.concatenate %31, %32 in 1 : vector<16x128xbf16>, vector<16x128xbf16> -> vector<16x256xbf16>
    %c0_15 = arith.constant 0 : index
    %c0_16 = arith.constant 0 : index
    %34 = vector.load %arg6[%c0_15, %c0_16] : memref<256x128xbf16, #tpu.memory_space<vmem>>, vector<256x128xbf16>
    %cst_17 = arith.constant dense<0.000000e+00> : vector<16x128xf32>
    %35 = tpu.matmul %33, %34, %cst_17 {dimension_numbers = #tpu.dot_dimension_numbers<[1], [0], [0], [1], [0, 0, 1, 1], [], []>} : vector<16x256xbf16>, vector<256x128xbf16>, vector<16x128xf32> -> vector<16x128xf32>
    %c0_18 = arith.constant 0 : index
    %c0_19 = arith.constant 0 : index
    %36 = vector.load %arg7[%c0_18, %c0_19] : memref<1x128xf32, #tpu.memory_space<vmem>>, vector<1x128xf32>
    %37 = vector.broadcast %36 : vector<1x128xf32> to vector<16x128xf32>
    %38 = arith.addf %35, %37 : vector<16x128xf32>
    %cst_20 = arith.constant 0.000000e+00 : f32
    %39 = vector.broadcast %cst_20 : f32 to vector<16x128xf32>
    %40 = arith.maximumf %38, %39 : vector<16x128xf32>
    %c0_21 = arith.constant 0 : index
    %c0_22 = arith.constant 0 : index
    %c0_23 = arith.constant 0 : index
    %41 = vector.load %arg2[%c0_21, %c0_22, %c0_23] : memref<1x16x128xbf16, #tpu.memory_space<vmem>>, vector<1x16x128xbf16>
    %42 = vector.shape_cast %41 : vector<1x16x128xbf16> to vector<16x128xbf16>
    %c0_24 = arith.constant 0 : index
    %c0_25 = arith.constant 0 : index
    %43 = vector.load %arg8[%c0_24, %c0_25] : memref<128x128xbf16, #tpu.memory_space<vmem>>, vector<128x128xbf16>
    %cst_26 = arith.constant dense<0.000000e+00> : vector<16x128xf32>
    %44 = tpu.matmul %42, %43, %cst_26 {dimension_numbers = #tpu.dot_dimension_numbers<[1], [0], [0], [1], [0, 0, 1, 1], [], []>} : vector<16x128xbf16>, vector<128x128xbf16>, vector<16x128xf32> -> vector<16x128xf32>
    %c0_27 = arith.constant 0 : index
    %c0_28 = arith.constant 0 : index
    %45 = vector.load %arg9[%c0_27, %c0_28] : memref<1x128xf32, #tpu.memory_space<vmem>>, vector<1x128xf32>
    %46 = vector.broadcast %45 : vector<1x128xf32> to vector<16x128xf32>
    %47 = arith.addf %44, %46 : vector<16x128xf32>
    %48 = arith.addf %40, %47 : vector<16x128xf32>
    %cst_29 = arith.constant 0.000000e+00 : f32
    %49 = vector.broadcast %cst_29 : f32 to vector<16x128xf32>
    %50 = arith.maximumf %48, %49 : vector<16x128xf32>
    %51 = arith.truncf %50 : vector<16x128xf32> to vector<16x128xbf16>
    %c0_30 = arith.constant 0 : index
    %c0_31 = arith.constant 0 : index
    %c0_32 = arith.constant 0 : index
    %52 = vector.load %arg10[%c0_30, %c0_31, %c0_32] : memref<1x16x128xbf16, #tpu.memory_space<vmem>>, vector<1x16x128xbf16>
    %53 = vector.shape_cast %52 : vector<1x16x128xbf16> to vector<16x128xbf16>
    %54 = vector.shape_cast %51 : vector<16x128xbf16> to vector<1x16x128xbf16>
    tpu.vector_store %arg10[%c0_30, %c0_31, %c0_32], %54 {strides = array<i32>} : memref<1x16x128xbf16, #tpu.memory_space<vmem>>, vector<1x16x128xbf16>,
    return
  }
  func.func @transform_0(%arg0: i32, %arg1: i32) -> (i32, i32, i32) {
    %c0_i32 = arith.constant 0 : i32
    %c0_i32_0 = arith.constant 0 : i32
    return %arg0, %arg1, %c0_i32 : i32, i32, i32
  }
  func.func @transform_1(%arg0: i32, %arg1: i32) -> (i32, i32, i32) {
    %c1_i32 = arith.constant 1 : i32
    %0 = arith.muli %arg1, %c1_i32 : i32
    %c1_i32_0 = arith.constant 1 : i32
    %1 = arith.subi %0, %c1_i32_0 : i32
    %c0_i32 = arith.constant 0 : i32
    %2 = arith.maxsi %1, %c0_i32 : i32
    %c0_i32_1 = arith.constant 0 : i32
    %c0_i32_2 = arith.constant 0 : i32
    return %arg0, %2, %c0_i32_1 : i32, i32, i32
  }
  func.func @transform_2(%arg0: i32, %arg1: i32) -> (i32, i32) {
    %c0_i32 = arith.constant 0 : i32
    %c0_i32_0 = arith.constant 0 : i32
    %c0_i32_1 = arith.constant 0 : i32
    return %c0_i32, %c0_i32_0 : i32, i32
  }
  func.func @transform_3(%arg0: i32, %arg1: i32) -> (i32, i32) {
    %c0_i32 = arith.constant 0 : i32
    %c0_i32_0 = arith.constant 0 : i32
    %c0_i32_1 = arith.constant 0 : i32
    return %c0_i32, %c0_i32_0 : i32, i32
  }
  func.func @transform_4(%arg0: i32, %arg1: i32) -> (i32, i32) {
    %c0_i32 = arith.constant 0 : i32
    %c0_i32_0 = arith.constant 0 : i32
    %c0_i32_1 = arith.constant 0 : i32
    return %c0_i32, %c0_i32_0 : i32, i32
  }
  func.func @transform_5(%arg0: i32, %arg1: i32) -> (i32, i32) {
    %c0_i32 = arith.constant 0 : i32
    %c0_i32_0 = arith.constant 0 : i32
    %c0_i32_1 = arith.constant 0 : i32
    return %c0_i32, %c0_i32_0 : i32, i32
  }
  func.func @transform_6(%arg0: i32, %arg1: i32) -> (i32, i32) {
    %c0_i32 = arith.constant 0 : i32
    %c0_i32_0 = arith.constant 0 : i32
    %c0_i32_1 = arith.constant 0 : i32
    return %c0_i32, %c0_i32_0 : i32, i32
  }
  func.func @transform_7(%arg0: i32, %arg1: i32) -> (i32, i32) {
    %c0_i32 = arith.constant 0 : i32
    %c0_i32_0 = arith.constant 0 : i32
    %c0_i32_1 = arith.constant 0 : i32
    return %c0_i32, %c0_i32_0 : i32, i32
  }
  func.func @transform_8(%arg0: i32, %arg1: i32) -> (i32, i32, i32) {
    %c0_i32 = arith.constant 0 : i32
    %c0_i32_0 = arith.constant 0 : i32
    return %arg0, %arg1, %c0_i32 : i32, i32, i32
  }
}

</mosaic_0001>

<llo_original>
// kernel: tpu_custom_call.1
$region0: #{tpu_custom_call.1}
  #allocation0 [shape = 'u32[]', space=smem, size = 0x4, offset = 0x4, fixed_abs, tag = 'smem constant byte address 0x4 - core index']
  #allocation1 [shape = 'u32[144,128]{1,0:T(1,128)}', space=vmem, size = 0x12000, scoped, tag = 'internal scratch']
  #allocation2 [shape = 'bf16[32,128]{1,0:T(16,128)(2,1)}', space=vmem, size = 0x2000, scoped, tag = 'scratch operand']
  %s0 = inlined_call_operand.hbm [shape: bf16[2,16,128], index: 0, kind: input, shape index: {}]
  %s1 = inlined_call_operand.hbm [shape: bf16[2,16,128], index: 1, kind: input, shape index: {}]
  %s2 = inlined_call_operand.hbm [shape: bf16[256,128], index: 2, kind: input, shape index: {}]
  %s3 = inlined_call_operand.vmem [shape: f32[1,128], index: 3, kind: input, shape index: {}]
  %s4 = inlined_call_operand.hbm [shape: bf16[256,128], index: 4, kind: input, shape index: {}]
  %s5 = inlined_call_operand.vmem [shape: f32[1,128], index: 5, kind: input, shape index: {}]
  %s6 = inlined_call_operand.hbm [shape: bf16[128,128], index: 6, kind: input, shape index: {}]
  %s7 = inlined_call_operand.vmem [shape: f32[1,128], index: 7, kind: input, shape index: {}]
  %s8 = inlined_call_operand.hbm [shape: bf16[2,16,128], index: 8, kind: output, shape index: {}]
  %s9 = sld [smem:[#allocation0]]
  $region93: #{tpu_custom_call.1} parent=0
    _
  %s11 = ssub.s32 1, %s9
  %s12 = scalar_select 0, %s11, %s9
  $region1: #{tpu_custom_call.1} parent=0
    #allocation3 [shape = 'u8[8192]{0}', space=vmem, size = 0x2000, scoped, tag = 'input window, operand 0']
    #allocation4 [shape = 's32[2]{0}', space=sflag, size = 0x8, scoped, tag = 'scoped memory for tpu_custom_call.1']
    #allocation5 [shape = 's32[2]{0}', space=sflag, size = 0x8, scoped, tag = 'scoped memory for tpu_custom_call.1']
    #allocation6 [shape = 'u8[8192]{0}', space=vmem, size = 0x2000, scoped, tag = 'input window, operand 1']
    #allocation7 [shape = 's32[2]{0}', space=sflag, size = 0x8, scoped, tag = 'scoped memory for tpu_custom_call.1']
    #allocation8 [shape = 'u8[65536]{0}', space=vmem, size = 0x10000, scoped, tag = 'input window, operand 2, single buffered']
    #allocation9 [shape = 'u8[65536]{0}', space=vmem, size = 0x10000, scoped, tag = 'input window, operand 4, single buffered']
    #allocation10 [shape = 's32[1]{0}', space=sflag, size = 0x4, scoped, tag = 'scoped memory for tpu_custom_call.1']
    #allocation11 [shape = 'u8[32768]{0}', space=vmem, size = 0x8000, scoped, tag = 'input window, operand 6, single buffered']
    #allocation12 [shape = 'u8[8192]{0}', space=vmem, size = 0x2000, scoped, tag = 'output window, operand 0']
    %13 = vsyncpa [#allocation4], 0
    %s14 = scalar_lea.sflag [#allocation4], 1
    %15 = vsyncpa %s14, 0
    %16 = vsyncpa [#allocation7], 0
    %s17 = scalar_lea.sflag [#allocation7], 1
    %18 = vsyncpa %s17, 0
    %19 = vsyncpa [#allocation10], 0
    %20 = vsyncpa [#allocation5], 0
    %s21 = scalar_lea.sflag [#allocation5], 1
    %22 = vsyncpa %s21, 0
    loop: start=0, step=1, limit=4
    $region2: #{tpu_custom_call.1} parent=1 // loop_pre_header
      _
    $region3: #{tpu_custom_call.1} parent=1 // loop_header
      %s24 = sphi 0, %s28
      %p25 = scmp.ge.s32.totalorder %s24, 4
      %s31 = sphi 0, %s43
      %s32 = sphi 0, %s39
      %s33 = sphi 0, %s31
      %s34 = sphi 0, %s32
      %s35 = sphi 0, %s33
      %s36 = sphi 0, %s34
      %s48 = sphi 0, %s50
      %s51 = sphi 0, %s48
      %s52 = sphi 0, %s51
      %s68 = sphi 0, %s52
      %s82 = sphi 0, %s84
      %s85 = sphi 0, %s82
      %s86 = sphi 0, %s85
      %s102 = sphi 0, %s86
      %s106 = sphi 0, %s106
      %s108 = sphi 0, %s106
      %s109 = sphi 0, %s108
      %s123 = sphi 0, %s109
      %s127 = sphi 0, %s127
      %s129 = sphi 0, %s127
      %s130 = sphi 0, %s129
      %s144 = sphi 0, %s130
      %s148 = sphi 0, %s148
      %s150 = sphi 0, %s148
      %s151 = sphi 0, %s150
      %s165 = sphi 0, %s151
      %s169 = sphi 0, %s169
      %s171 = sphi 0, %s169
      %s172 = sphi 0, %s171
      %s186 = sphi 0, %s172
      %s190 = sphi 0, %s190
      %s192 = sphi 0, %s190
      %s193 = sphi 0, %s192
      %s207 = sphi 0, %s193
      %s211 = sphi 0, %s211
      %s213 = sphi 0, %s211
      %s214 = sphi 0, %s213
      %s228 = sphi 0, %s214
      %s236 = sphi 0, %s238
      %s239 = sphi 0, %s236
      %s240 = sphi 0, %s239
      %s256 = sphi 0, %s240
    $region4: #{tpu_custom_call.1} parent=1 // loop_header_branch
      %27 = sbr.rel (%p25) target = $region8
    $region5: #{tpu_custom_call.1} parent=1 // loop_body
      %s29 = ssub.s32 %s24, 1
      %s30 = ssub.s32 %s24, 2
      %s37 = sadd.s32 1, %s32
      %p38 = scmp.ge.s32.totalorder %s37, 1
      %s39 = scalar_select %p38, 0, %s37
      %s40 = sadd.s32 1, %s31
      %s41 = scalar_select %p38, %s40, %s31
      %p42 = scmp.ge.s32.totalorder %s41, 2
      %s43 = scalar_select %p42, 0, %s41
      %s44 = ssub.s32 %s31, %s43
      %s45 = ssub.s32 %s32, %s39
      %s46 = sor.u32 %s44, %s45
      %p47 = scmp.eq.s32.totalorder %s46, 0
      %s49 = sadd.s32 %s48, 1
      %s50 = scalar_select %p47, %s48, %s49
      %p53 = pneg %p47
      %p54 = scmp.eq.s32.totalorder %s24, 1
      %p55 = por %p53, %p54
      %p56 = scmp.ne.s32.totalorder %s48, %s51
      %p57 = scmp.eq.s32.totalorder %s24, 0
      %p58 = por %p56, %p57
      %p59 = scmp.ne.s32.totalorder %s48, %s51
      %p60 = scmp.eq.s32.totalorder %s29, 1
      %p61 = por %p59, %p60
      %p62 = scmp.ne.s32.totalorder %s51, %s52
      %p63 = scmp.eq.s32.totalorder %s29, 0
      %p64 = por %p62, %p63
      %p65 = scmp.ne.s32.totalorder %s51, %s52
      %p66 = scmp.eq.s32.totalorder %s30, 1
      %p67 = por %p65, %p66
      %p69 = scmp.ne.s32.totalorder %s52, %s68
      %p70 = scmp.eq.s32.totalorder %s30, 0
      %p71 = por %p69, %p70
      %s72 = ssub.s32 %s32, 1
      %p73 = scmp.gt.s32.totalorder %s72, 0
      %s74 = scalar_select %p73, %s72, 0
      %s75 = ssub.s32 %s39, 1
      %p76 = scmp.gt.s32.totalorder %s75, 0
      %s77 = scalar_select %p76, %s75, 0
      %s78 = ssub.s32 %s31, %s43
      %s79 = ssub.s32 %s74, %s77
      %s80 = sor.u32 %s78, %s79
      %p81 = scmp.eq.s32.totalorder %s80, 0
      %s83 = sadd.s32 %s82, 1
      %s84 = scalar_select %p81, %s82, %s83
      %p87 = pneg %p81
      %p88 = scmp.eq.s32.totalorder %s24, 1
      %p89 = por %p87, %p88
      %p90 = scmp.ne.s32.totalorder %s82, %s85
      %p91 = scmp.eq.s32.totalorder %s24, 0
      %p92 = por %p90, %p91
      %p93 = scmp.ne.s32.totalorder %s82, %s85
      %p94 = scmp.eq.s32.totalorder %s29, 1
      %p95 = por %p93, %p94
      %p96 = scmp.ne.s32.totalorder %s85, %s86
      %p97 = scmp.eq.s32.totalorder %s29, 0
      %p98 = por %p96, %p97
      %p99 = scmp.ne.s32.totalorder %s85, %s86
      %p100 = scmp.eq.s32.totalorder %s30, 1
      %p101 = por %p99, %p100
      %p103 = scmp.ne.s32.totalorder %s86, %s102
      %p104 = scmp.eq.s32.totalorder %s30, 0
      %p105 = por %p103, %p104
      %s107 = sadd.s32 %s106, 1
      %p110 = scmp.eq.s32.totalorder %s24, 1
      %p111 = scmp.ne.s32.totalorder %s106, %s108
      %p112 = scmp.eq.s32.totalorder %s24, 0
      %p113 = por %p111, %p112
      %p114 = scmp.ne.s32.totalorder %s106, %s108
      %p115 = scmp.eq.s32.totalorder %s29, 1
      %p116 = por %p114, %p115
      %p117 = scmp.ne.s32.totalorder %s108, %s109
      %p118 = scmp.eq.s32.totalorder %s29, 0
      %p119 = por %p117, %p118
      %p120 = scmp.ne.s32.totalorder %s108, %s109
      %p121 = scmp.eq.s32.totalorder %s30, 1
      %p122 = por %p120, %p121
      %p124 = scmp.ne.s32.totalorder %s109, %s123
      %p125 = scmp.eq.s32.totalorder %s30, 0
      %p126 = por %p124, %p125
      %s128 = sadd.s32 %s127, 1
      %p131 = scmp.eq.s32.totalorder %s24, 1
      %p132 = scmp.ne.s32.totalorder %s127, %s129
      %p133 = scmp.eq.s32.totalorder %s24, 0
      %p134 = por %p132, %p133
      %p135 = scmp.ne.s32.totalorder %s127, %s129
      %p136 = scmp.eq.s32.totalorder %s29, 1
      %p137 = por %p135, %p136
      %p138 = scmp.ne.s32.totalorder %s129, %s130
      %p139 = scmp.eq.s32.totalorder %s29, 0
      %p140 = por %p138, %p139
      %p141 = scmp.ne.s32.totalorder %s129, %s130
      %p142 = scmp.eq.s32.totalorder %s30, 1
      %p143 = por %p141, %p142
      %p145 = scmp.ne.s32.totalorder %s130, %s144
      %p146 = scmp.eq.s32.totalorder %s30, 0
      %p147 = por %p145, %p146
      %s149 = sadd.s32 %s148, 1
      %p152 = scmp.eq.s32.totalorder %s24, 1
      %p153 = scmp.ne.s32.totalorder %s148, %s150
      %p154 = scmp.eq.s32.totalorder %s24, 0
      %p155 = por %p153, %p154
      %p156 = scmp.ne.s32.totalorder %s148, %s150
      %p157 = scmp.eq.s32.totalorder %s29, 1
      %p158 = por %p156, %p157
      %p159 = scmp.ne.s32.totalorder %s150, %s151
      %p160 = scmp.eq.s32.totalorder %s29, 0
      %p161 = por %p159, %p160
      %p162 = scmp.ne.s32.totalorder %s150, %s151
      %p163 = scmp.eq.s32.totalorder %s30, 1
      %p164 = por %p162, %p163
      %p166 = scmp.ne.s32.totalorder %s151, %s165
      %p167 = scmp.eq.s32.totalorder %s30, 0
      %p168 = por %p166, %p167
      %s170 = sadd.s32 %s169, 1
      %p173 = scmp.eq.s32.totalorder %s24, 1
      %p174 = scmp.ne.s32.totalorder %s169, %s171
      %p175 = scmp.eq.s32.totalorder %s24, 0
      %p176 = por %p174, %p175
      %p177 = scmp.ne.s32.totalorder %s169, %s171
      %p178 = scmp.eq.s32.totalorder %s29, 1
      %p179 = por %p177, %p178
      %p180 = scmp.ne.s32.totalorder %s171, %s172
      %p181 = scmp.eq.s32.totalorder %s29, 0
      %p182 = por %p180, %p181
      %p183 = scmp.ne.s32.totalorder %s171, %s172
      %p184 = scmp.eq.s32.totalorder %s30, 1
      %p185 = por %p183, %p184
      %p187 = scmp.ne.s32.totalorder %s172, %s186
      %p188 = scmp.eq.s32.totalorder %s30, 0
      %p189 = por %p187, %p188
      %s191 = sadd.s32 %s190, 1
      %p194 = scmp.eq.s32.totalorder %s24, 1
      %p195 = scmp.ne.s32.totalorder %s190, %s192
      %p196 = scmp.eq.s32.totalorder %s24, 0
      %p197 = por %p195, %p196
      %p198 = scmp.ne.s32.totalorder %s190, %s192
      %p199 = scmp.eq.s32.totalorder %s29, 1
      %p200 = por %p198, %p199
      %p201 = scmp.ne.s32.totalorder %s192, %s193
      %p202 = scmp.eq.s32.totalorder %s29, 0
      %p203 = por %p201, %p202
      %p204 = scmp.ne.s32.totalorder %s192, %s193
      %p205 = scmp.eq.s32.totalorder %s30, 1
      %p206 = por %p204, %p205
      %p208 = scmp.ne.s32.totalorder %s193, %s207
      %p209 = scmp.eq.s32.totalorder %s30, 0
      %p210 = por %p208, %p209
      %s212 = sadd.s32 %s211, 1
      %p215 = scmp.eq.s32.totalorder %s24, 1
      %p216 = scmp.ne.s32.totalorder %s211, %s213
      %p217 = scmp.eq.s32.totalorder %s24, 0
      %p218 = por %p216, %p217
      %p219 = scmp.ne.s32.totalorder %s211, %s213
      %p220 = scmp.eq.s32.totalorder %s29, 1
      %p221 = por %p219, %p220
      %p222 = scmp.ne.s32.totalorder %s213, %s214
      %p223 = scmp.eq.s32.totalorder %s29, 0
      %p224 = por %p222, %p223
      %p225 = scmp.ne.s32.totalorder %s213, %s214
      %p226 = scmp.eq.s32.totalorder %s30, 1
      %p227 = por %p225, %p226
      %p229 = scmp.ne.s32.totalorder %s214, %s228
      %p230 = scmp.eq.s32.totalorder %s30, 0
      %p231 = por %p229, %p230
      %s232 = ssub.s32 %s31, %s43
      %s233 = ssub.s32 %s32, %s39
      %s234 = sor.u32 %s232, %s233
      %p235 = scmp.eq.s32.totalorder %s234, 0
      %s237 = sadd.s32 %s236, 1
      %s238 = scalar_select %p235, %s236, %s237
      %p241 = pneg %p235
      %p242 = scmp.eq.s32.totalorder %s24, 1
      %p243 = por %p241, %p242
      %p244 = scmp.ne.s32.totalorder %s236, %s239
      %p245 = scmp.eq.s32.totalorder %s24, 0
      %p246 = por %p244, %p245
      %p247 = scmp.ne.s32.totalorder %s236, %s239
      %p248 = scmp.eq.s32.totalorder %s29, 1
      %p249 = por %p247, %p248
      %p250 = scmp.ne.s32.totalorder %s239, %s240
      %p251 = scmp.eq.s32.totalorder %s29, 0
      %p252 = por %p250, %p251
      %p253 = scmp.ne.s32.totalorder %s239, %s240
      %p254 = scmp.eq.s32.totalorder %s30, 1
      %p255 = por %p253, %p254
      %p257 = scmp.ne.s32.totalorder %s240, %s256
      %p258 = scmp.eq.s32.totalorder %s30, 0
      %p259 = por %p257, %p258
      %p260 = scmp.le.s32.totalorder 1, %s24
      %p261 = scmp.lt.s32.totalorder %s24, 3
      %p262 = pnand %p260, %p261
      %p263 = pneg %p262
      // Predicated region
      $region9: #{tpu_custom_call.1} parent=5 // pred_check
        _
      $region10: #{tpu_custom_call.1} parent=5 // pred_check_branch
        %265 = sbr.rel (%p262) target = $region12
      $region11: #{tpu_custom_call.1} parent=5 // pred_region
        %s266 = ssub.s32 %s24, 1
        // Predicated region
        $region13: #{tpu_custom_call.1} parent=11 // pred_check
          %p267 = pneg %p119
        $region14: #{tpu_custom_call.1} parent=11 // pred_check_branch
          %269 = sbr.rel (%p267) target = $region16
        $region15: #{tpu_custom_call.1} parent=11 // pred_region
          %s271 = ssub.s32 2048, 2048
          %272 = vsyncadd [#allocation7], %s271
          %s273 = sshll.u32 [#allocation8], 4
          %s274 = int_to_ptr.vmem [resolvable:$true] %s273
          %279 = dma.hbm_to_vmem [thread:$0]  %s2, 2048, %s274, [#allocation7], 64, 64, 4
        $region16: #{tpu_custom_call.1} parent=11 // pred_fallthru
          _
        // Predicated region
        $region17: #{tpu_custom_call.1} parent=11 // pred_check
          %p280 = pneg %p140
        $region18: #{tpu_custom_call.1} parent=11 // pred_check_branch
          %282 = sbr.rel (%p280) target = $region20
        $region19: #{tpu_custom_call.1} parent=11 // pred_region
          _
        $region20: #{tpu_custom_call.1} parent=11 // pred_fallthru
          _
        // Predicated region
        $region21: #{tpu_custom_call.1} parent=11 // pred_check
          %p283 = pneg %p161
        $region22: #{tpu_custom_call.1} parent=11 // pred_check_branch
          %285 = sbr.rel (%p283) target = $region24
        $region23: #{tpu_custom_call.1} parent=11 // pred_region
          %s287 = ssub.s32 2048, 2048
          %288 = vsyncadd [#allocation10], %s287
          %s289 = sshll.u32 [#allocation9], 4
          %s290 = int_to_ptr.vmem [resolvable:$true] %s289
          %295 = dma.hbm_to_vmem [thread:$0]  %s4, 2048, %s290, [#allocation10], 64, 64, 4
        $region24: #{tpu_custom_call.1} parent=11 // pred_fallthru
          _
        // Predicated region
        $region25: #{tpu_custom_call.1} parent=11 // pred_check
          %p296 = pneg %p182
        $region26: #{tpu_custom_call.1} parent=11 // pred_check_branch
          %298 = sbr.rel (%p296) target = $region28
        $region27: #{tpu_custom_call.1} parent=11 // pred_region
          _
        $region28: #{tpu_custom_call.1} parent=11 // pred_fallthru
          _
        // Predicated region
        $region29: #{tpu_custom_call.1} parent=11 // pred_check
          %p299 = pneg %p203
        $region30: #{tpu_custom_call.1} parent=11 // pred_check_branch
          %301 = sbr.rel (%p299) target = $region32
        $region31: #{tpu_custom_call.1} parent=11 // pred_region
          %s303 = ssub.s32 1024, 1024
          %304 = vsyncadd [#allocation10], %s303
          %s305 = sshll.u32 [#allocation11], 4
          %s306 = int_to_ptr.vmem [resolvable:$true] %s305
          %311 = dma.hbm_to_vmem [thread:$0]  %s6, 1024, %s306, [#allocation10], 64, 64, 4
        $region32: #{tpu_custom_call.1} parent=11 // pred_fallthru
          _
        // Predicated region
        $region33: #{tpu_custom_call.1} parent=11 // pred_check
          %p312 = pneg %p224
        $region34: #{tpu_custom_call.1} parent=11 // pred_check_branch
          %314 = sbr.rel (%p312) target = $region36
        $region35: #{tpu_custom_call.1} parent=11 // pred_region
          _
        $region36: #{tpu_custom_call.1} parent=11 // pred_fallthru
          _
      $region12: #{tpu_custom_call.1} parent=5 // pred_fallthru
        _
      %p315 = scmp.lt.s32.totalorder %s24, 2
      // Predicated region
      $region37: #{tpu_custom_call.1} parent=5 // pred_check
        %p316 = pneg %p315
      $region38: #{tpu_custom_call.1} parent=5 // pred_check_branch
        %318 = sbr.rel (%p316) target = $region40
      $region39: #{tpu_custom_call.1} parent=5 // pred_region
        // Predicated region
        $region41: #{tpu_custom_call.1} parent=39 // pred_check
          %p319 = pneg %p58
        $region42: #{tpu_custom_call.1} parent=39 // pred_check_branch
          %321 = sbr.rel (%p319) target = $region44
        $region43: #{tpu_custom_call.1} parent=39 // pred_region
          %s322 = sand.u32 %s48, 1
          %s323 = scalar_lea.sflag [#allocation4], %s322
          %s324 = sand.u32 %s48, 1
          %s325 = smul.addr %s324, 8
          %s326 = scalar_lea.vmem [#allocation3], %s325
          %s327 = smul.u32 2, %s32
          %s329 = ssub.s32 128, 128
          %330 = vsyncadd %s323, %s329
          %s331 = smul.addr %s31, 2
          %s332 = sadd.s32 %s327, %s331
          %s333 = smul.addr %s332, 64
          %s334 = scalar_lea.hbm %s0, %s333
          %s335 = sshll.u32 %s326, 4
          %s336 = int_to_ptr.vmem [resolvable:$true] %s335
          %341 = dma.hbm_to_vmem [thread:$0]  %s334, 128, %s336, %s323, 64, 64, 4
        $region44: #{tpu_custom_call.1} parent=39 // pred_fallthru
          _
        // Predicated region
        $region45: #{tpu_custom_call.1} parent=39 // pred_check
          %p342 = pneg %p92
        $region46: #{tpu_custom_call.1} parent=39 // pred_check_branch
          %344 = sbr.rel (%p342) target = $region48
        $region47: #{tpu_custom_call.1} parent=39 // pred_region
          %s345 = sand.u32 %s24, 1
          %s346 = scalar_lea.sflag [#allocation7], %s345
          %s347 = sand.u32 %s82, 1
          %s348 = smul.addr %s347, 8
          %s349 = scalar_lea.vmem [#allocation6], %s348
          %s350 = ssub.s32 %s32, 1
          %p351 = scmp.gt.s32.totalorder %s350, 0
          %s352 = scalar_select %p351, %s350, 0
          %s353 = smul.u32 2, %s352
          %s355 = ssub.s32 128, 128
          %356 = vsyncadd %s346, %s355
          %s357 = smul.addr %s31, 2
          %s358 = sadd.s32 %s353, %s357
          %s359 = smul.addr %s358, 64
          %s360 = scalar_lea.hbm %s1, %s359
          %s361 = sshll.u32 %s349, 4
          %s362 = int_to_ptr.vmem [resolvable:$true] %s361
          %367 = dma.hbm_to_vmem [thread:$0]  %s360, 128, %s362, %s346, 64, 64, 4
        $region48: #{tpu_custom_call.1} parent=39 // pred_fallthru
          _
      $region40: #{tpu_custom_call.1} parent=5 // pred_fallthru
        _
      %p368 = scmp.le.s32.totalorder 1, %s24
      %p369 = scmp.lt.s32.totalorder %s24, 3
      %p370 = pnand %p368, %p369
      %p371 = pneg %p370
      // Predicated region
      $region49: #{tpu_custom_call.1} parent=5 // pred_check
        _
      $region50: #{tpu_custom_call.1} parent=5 // pred_check_branch
        %373 = sbr.rel (%p370) target = $region52
      $region51: #{tpu_custom_call.1} parent=5 // pred_region
        %s374 = ssub.s32 %s24, 1
        %s375 = sand.u32 %s51, 1
        %s376 = scalar_lea.sflag [#allocation4], %s375
        %s377 = sand.u32 %s51, 1
        %s378 = smul.addr %s377, 8
        %s379 = scalar_lea.vmem [#allocation3], %s378
        // Predicated region
        $region53: #{tpu_custom_call.1} parent=51 // pred_check
          %p380 = pneg %p64
        $region54: #{tpu_custom_call.1} parent=51 // pred_check_branch
          %382 = sbr.rel (%p380) target = $region56
        $region55: #{tpu_custom_call.1} parent=51 // pred_region
          %383 = dma.done %s376, 128
        $region56: #{tpu_custom_call.1} parent=51 // pred_fallthru
          _
        %s384 = sand.u32 %s29, 1
        %s385 = scalar_lea.sflag [#allocation7], %s384
        %s386 = sand.u32 %s85, 1
        %s387 = smul.addr %s386, 8
        %s388 = scalar_lea.vmem [#allocation6], %s387
        // Predicated region
        $region57: #{tpu_custom_call.1} parent=51 // pred_check
          %p389 = pneg %p98
        $region58: #{tpu_custom_call.1} parent=51 // pred_check_branch
          %391 = sbr.rel (%p389) target = $region60
        $region59: #{tpu_custom_call.1} parent=51 // pred_region
          %392 = dma.done %s385, 128
        $region60: #{tpu_custom_call.1} parent=51 // pred_fallthru
          _
        // Predicated region
        $region61: #{tpu_custom_call.1} parent=51 // pred_check
          %p393 = pneg %p119
        $region62: #{tpu_custom_call.1} parent=51 // pred_check_branch
          %395 = sbr.rel (%p393) target = $region64
        $region63: #{tpu_custom_call.1} parent=51 // pred_region
          %396 = dma.done [#allocation7], 2048
        $region64: #{tpu_custom_call.1} parent=51 // pred_fallthru
          _
        // Predicated region
        $region65: #{tpu_custom_call.1} parent=51 // pred_check
          %p397 = pneg %p161
        $region66: #{tpu_custom_call.1} parent=51 // pred_check_branch
          %399 = sbr.rel (%p397) target = $region68
        $region67: #{tpu_custom_call.1} parent=51 // pred_region
          %400 = dma.done [#allocation10], 2048
        $region68: #{tpu_custom_call.1} parent=51 // pred_fallthru
          _
        // Predicated region
        $region69: #{tpu_custom_call.1} parent=51 // pred_check
          %p401 = pneg %p203
        $region70: #{tpu_custom_call.1} parent=51 // pred_check_branch
          %403 = sbr.rel (%p401) target = $region72
        $region71: #{tpu_custom_call.1} parent=51 // pred_region
          %404 = dma.done [#allocation10], 1024
        $region72: #{tpu_custom_call.1} parent=51 // pred_fallthru
          _
        %s405 = sand.u32 %s51, 1
        %s406 = scalar_lea.sflag [#allocation4], %s405
        %s407 = sand.u32 %s51, 1
        %s408 = smul.addr %s407, 8
        %s409 = scalar_lea.vmem [#allocation3], %s408
        %p410 = pneg %p64
        %p411 = pneg %p61
        %s412 = sand.u32 %s29, 1
        %s413 = scalar_lea.sflag [#allocation7], %s412
        %s414 = sand.u32 %s85, 1
        %s415 = smul.addr %s414, 8
        %s416 = scalar_lea.vmem [#allocation6], %s415
        %p417 = pneg %p98
        %p418 = pneg %p95
        %p419 = pneg %p119
        %p420 = pneg %p116
        %p421 = pneg %p140
        %p422 = pneg %p137
        %p423 = pneg %p161
        %p424 = pneg %p158
        %p425 = pneg %p182
        %p426 = pneg %p179
        %p427 = pneg %p203
        %p428 = pneg %p200
        %p429 = pneg %p224
        %p430 = pneg %p221
        %p431 = pneg %p252
        %p432 = pneg %p249
        %s433 = sand.u32 %s239, 1
        %s434 = scalar_lea.sflag [#allocation5], %s433
        %s435 = sand.u32 %s239, 1
        %s436 = smul.addr %s435, 8
        %s437 = scalar_lea.vmem [#allocation12], %s436
        %s438 = smul.u32 2, %s34
        %s439 = ssub.s32 %s34, 1
        %p440 = scmp.gt.s32.totalorder %s439, 0
        %s441 = scalar_select %p440, %s439, 0
        %s442 = smul.u32 2, %s441
        %s443 = smul.u32 2, %s34
        %p445 = scmp.eq.s32.totalorder %s34, 0
        // Predicated region
        $region73: #{tpu_custom_call.1} parent=51 // pred_check
          %p446 = pneg %p445
        $region74: #{tpu_custom_call.1} parent=51 // pred_check_branch
          %448 = sbr.rel (%p446) target = $region76
        $region75: #{tpu_custom_call.1} parent=51 // pred_region
          %449 = vst [vmem:[#allocation2] sm:$0xff] 0
        $region76: #{tpu_custom_call.1} parent=51 // pred_fallthru
          _
        %p450 = scmp.gt.s32.totalorder %s34, 0
        // Predicated region
        $region77: #{tpu_custom_call.1} parent=51 // pred_check
          %p451 = pneg %p450
        $region78: #{tpu_custom_call.1} parent=51 // pred_check_branch
          %453 = sbr.rel (%p451) target = $region80
        $region79: #{tpu_custom_call.1} parent=51 // pred_region
          %v454 = vld [vmem:[%s388] sm:$0xf]
          %v455 = vld [vmem:[%s388 + $0x4] sm:$0xf]
          %v458 = vunpack.c.l.b16 %v454
          %v459 = vunpack.c.l.b16 %v455
          %v460 = vpack.c.b16 %v459, %v458
          %462 = vst [vmem:[#allocation2] sm:$0xff] %v460
        $region80: #{tpu_custom_call.1} parent=51 // pred_fallthru
          _
        %v463 = vld [vmem:[%s379] sm:$0xf]
        %v464 = vld [vmem:[%s379 + $0x4] sm:$0xf]
        %v467 = vunpack.c.l.b16 %v463
        %v468 = vunpack.c.l.b16 %v464
        %v469 = vpack.c.b16 %v468, %v467
        %471 = vst [vmem:[#allocation2 + $0x8] sm:$0xff] %v469
        %v472 = vld [vmem:[#allocation2] sm:$0xf8]
        %v473 = vld [vmem:[#allocation2 + $0x8] sm:$0xff]
        %v474 = vld [vmem:[#allocation2] sm:$0xf0]
        %vm475 = vsmask.f32 7424
        %v477 = vshrl.u32 %v474, 16
        %v479 = vshll.u32 %v474, 16
        %v481 = vrot.slane %v479, 1
        %v482 = vor.u32 %v477, %v481
        %v484 = vshll.u32 %v473, 16
        %v486 = vrot.slane %v484, 1
        %v487 = vsel %vm475, %v482, %v486
        %v488 = vshrl.u32 %v473, 16
        %v490 = vor.u32 %v488, %v486
        %v491 = vld [vmem:[#allocation8] sm:$0xf]
        %v492 = vld [vmem:[#allocation8 + $0x4] sm:$0xf]
        %v493 = vld [vmem:[#allocation8 + $0x8] sm:$0xf]
        %v494 = vld [vmem:[#allocation8 + $0xc] sm:$0xf]
        %v495 = vld [vmem:[#allocation8 + $0x10] sm:$0xf]
        %v496 = vld [vmem:[#allocation8 + $0x14] sm:$0xf]
        %v497 = vld [vmem:[#allocation8 + $0x18] sm:$0xf]
        %v498 = vld [vmem:[#allocation8 + $0x1c] sm:$0xf]
        %v499 = vld [vmem:[#allocation8 + $0x20] sm:$0xf]
        %v500 = vld [vmem:[#allocation8 + $0x24] sm:$0xf]
        %v501 = vld [vmem:[#allocation8 + $0x28] sm:$0xf]
        %v502 = vld [vmem:[#allocation8 + $0x2c] sm:$0xf]
        %v503 = vld [vmem:[#allocation8 + $0x30] sm:$0xf]
        %v504 = vld [vmem:[#allocation8 + $0x34] sm:$0xf]
        %v505 = vld [vmem:[#allocation8 + $0x38] sm:$0xf]
        %v506 = vld [vmem:[#allocation8 + $0x3c] sm:$0xf]
        %v507 = vld [vmem:[#allocation8 + $0x40] sm:$0xf]
        %v508 = vld [vmem:[#allocation8 + $0x44] sm:$0xf]
        %v509 = vld [vmem:[#allocation8 + $0x48] sm:$0xf]
        %v510 = vld [vmem:[#allocation8 + $0x4c] sm:$0xf]
        %v511 = vld [vmem:[#allocation8 + $0x50] sm:$0xf]
        %v512 = vld [vmem:[#allocation8 + $0x54] sm:$0xf]
        %v513 = vld [vmem:[#allocation8 + $0x58] sm:$0xf]
        %v514 = vld [vmem:[#allocation8 + $0x5c] sm:$0xf]
        %v515 = vld [vmem:[#allocation8 + $0x60] sm:$0xf]
        %v516 = vld [vmem:[#allocation8 + $0x64] sm:$0xf]
        %v517 = vld [vmem:[#allocation8 + $0x68] sm:$0xf]
        %v518 = vld [vmem:[#allocation8 + $0x6c] sm:$0xf]
        %v519 = vld [vmem:[#allocation8 + $0x70] sm:$0xf]
        %v520 = vld [vmem:[#allocation8 + $0x74] sm:$0xf]
        %v521 = vld [vmem:[#allocation8 + $0x78] sm:$0xf]
        %v522 = vld [vmem:[#allocation8 + $0x7c] sm:$0xf]
        %v523 = vld [vmem:[%s3] sm:$0x1]
        %v525 = vlaneseq
        %v526 = vshrl.u32 %v525, 7
        %v527 = vsub.s32 0, %v526
        %v528 = vrot.slane %v523, %v527
        %vm530 = vsmask.f32 4352
        %v532 = vshrl.u32 %v472, 16
        %v534 = vrot.slane %v532, 3
        %v535 = vshll.u32 %v472, 16
        %v537 = vrot.slane %v535, 4
        %v538 = vor.u32 %v534, %v537
        %v539 = vrot.slane %v488, 3
        %v540 = vrot.slane %v484, 4
        %v541 = vor.u32 %v539, %v540
        %v542 = vsel %vm530, %v538, %v541
        %v544 = vshrl.u32 %v487, 16
        %v546 = vrot.slane %v544, 3
        %v547 = vshll.u32 %v487, 16
        %v549 = vrot.slane %v547, 4
        %v550 = vor.u32 %v546, %v549
        %v552 = vshrl.u32 %v490, 16
        %v554 = vrot.slane %v552, 3
        %v555 = vshll.u32 %v490, 16
        %v557 = vrot.slane %v555, 4
        %v558 = vor.u32 %v554, %v557
        %v559 = vsel %vm530, %v550, %v558
        %v596 = vunpack.c.l.b16 %v491
        %v597 = vunpack.c.l.b16 %v492
        %v598 = vunpack.c.l.b16 %v493
        %v599 = vunpack.c.l.b16 %v494
        %v600 = vunpack.c.l.b16 %v495
        %v601 = vunpack.c.l.b16 %v496
        %v602 = vunpack.c.l.b16 %v497
        %v603 = vunpack.c.l.b16 %v498
        %v604 = vunpack.c.l.b16 %v499
        %v605 = vunpack.c.l.b16 %v500
        %v606 = vunpack.c.l.b16 %v501
        %v607 = vunpack.c.l.b16 %v502
        %v608 = vunpack.c.l.b16 %v503
        %v609 = vunpack.c.l.b16 %v504
        %v610 = vunpack.c.l.b16 %v505
        %v611 = vunpack.c.l.b16 %v506
        %v612 = vunpack.c.l.b16 %v507
        %v613 = vunpack.c.l.b16 %v508
        %v614 = vunpack.c.l.b16 %v509
        %v615 = vunpack.c.l.b16 %v510
        %v616 = vunpack.c.l.b16 %v511
        %v617 = vunpack.c.l.b16 %v512
        %v618 = vunpack.c.l.b16 %v513
        %v619 = vunpack.c.l.b16 %v514
        %v620 = vunpack.c.l.b16 %v515
        %v621 = vunpack.c.l.b16 %v516
        %v622 = vunpack.c.l.b16 %v517
        %v623 = vunpack.c.l.b16 %v518
        %v624 = vunpack.c.l.b16 %v519
        %v625 = vunpack.c.l.b16 %v520
        %v626 = vunpack.c.l.b16 %v521
        %v627 = vunpack.c.l.b16 %v522
        %v628 = vpack.c.b16 %v597, %v596
        %v629 = vpack.c.b16 %v599, %v598
        %v630 = vpack.c.b16 %v601, %v600
        %v631 = vpack.c.b16 %v603, %v602
        %v632 = vpack.c.b16 %v605, %v604
        %v633 = vpack.c.b16 %v607, %v606
        %v634 = vpack.c.b16 %v609, %v608
        %v635 = vpack.c.b16 %v611, %v610
        %v636 = vpack.c.b16 %v613, %v612
        %v637 = vpack.c.b16 %v615, %v614
        %v638 = vpack.c.b16 %v617, %v616
        %v639 = vpack.c.b16 %v619, %v618
        %v640 = vpack.c.b16 %v621, %v620
        %v641 = vpack.c.b16 %v623, %v622
        %v642 = vpack.c.b16 %v625, %v624
        %v643 = vpack.c.b16 %v627, %v626
        %660 = vmatprep.subr.bf16.mxu0 0
        %661 = vmatpush1.bf16.msra.mxu0 %v628
        %662 = vmatprep.subr.bf16.mxu0 0
        %663 = vmatpush1.bf16.msra.mxu0 %v629
        %664 = vmatprep.subr.bf16.mxu0 0
        %665 = vmatpush1.bf16.msra.mxu0 %v630
        %666 = vmatprep.subr.bf16.mxu0 0
        %667 = vmatpush1.bf16.msra.mxu0 %v631
        %668 = vmatprep.subr.bf16.mxu0 0
        %669 = vmatpush1.bf16.msra.mxu0 %v632
        %670 = vmatprep.subr.bf16.mxu0 0
        %671 = vmatpush1.bf16.msra.mxu0 %v633
        %672 = vmatprep.subr.bf16.mxu0 0
        %673 = vmatpush1.bf16.msra.mxu0 %v634
        %674 = vmatprep.subr.bf16.mxu0 0
        %675 = vmatpush1.bf16.msra.mxu0 %v635
        %676 = vmatprep.subr.bf16.mxu0 0
        %677 = vmatpush1.bf16.msra.mxu0 %v636
        %678 = vmatprep.subr.bf16.mxu0 0
        %679 = vmatpush1.bf16.msra.mxu0 %v637
        %680 = vmatprep.subr.bf16.mxu0 0
        %681 = vmatpush1.bf16.msra.mxu0 %v638
        %682 = vmatprep.subr.bf16.mxu0 0
        %683 = vmatpush1.bf16.msra.mxu0 %v639
        %684 = vmatprep.subr.bf16.mxu0 0
        %685 = vmatpush1.bf16.msra.mxu0 %v640
        %686 = vmatprep.subr.bf16.mxu0 0
        %687 = vmatpush1.bf16.msra.mxu0 %v641
        %688 = vmatprep.subr.bf16.mxu0 0
        %689 = vmatpush1.bf16.msra.mxu0 %v642
        %690 = vmatprep.subr.bf16.mxu0 0
        %691 = vmatpush1.bf16.msra.mxu0 %v643
        %692 = vmatprep.mubr.bf16.mxu0 %v559
        %693 = vmatmul.mubr.bf16.gmra.mrb[0].mxu0 %v542
        %v694 = vpop.f32.mrb[0].mxu0
        %v695 = vadd.f32 %v528, %v694
        %v696 = vpop.f32.mrb[0].mxu0
        %v697 = vpop.f32.mrb[0].mxu0
        %v698 = vadd.f32 %v528, %v697
        %v699 = vpop.f32.mrb[0].mxu0
        %700 = vmatprep.mubr.bf16.mxu0 %v558
        %701 = vmatmul.mubr.bf16.gmra.mrb[0].mxu0 %v541
        %v702 = vpop.f32.mrb[0].mxu0
        %v703 = vadd.f32 %v528, %v702
        %v704 = vpop.f32.mrb[0].mxu0
        %v705 = vpop.f32.mrb[0].mxu0
        %v706 = vpop.f32.mrb[0].mxu0
        %707 = vdwg.mxu0
        %v708 = vmax.f32 %v695, 0.0
        %v709 = vmax.f32 %v698, 0.0
        %v710 = vmax.f32 %v703, 0.0
        %s711 = smul.u32 %s34, 16
        %s712 = ssub.s32 %s711, 8
        %v713 = vlaneseq
        %v714 = vshrl.u32 %v713, 7
        %v715 = vadd.s32 %v714, 8
        %v716 = vadd.s32 %v714, 16
        %v717 = vstv %s712
        %v718 = vadd.s32 %v717, %v714
        %v719 = vadd.s32 %v717, %v715
        %v720 = vadd.s32 %v717, %v716
        %vm721 = vcmp.ge.s32.totalorder %v718, 0
        %vm722 = vcmp.ge.s32.totalorder %v719, 0
        %vm723 = vcmp.ge.s32.totalorder %v720, 0
        %v724 = vsel %vm721, 1, 0
        %v725 = vsel %vm722, 1, 0
        %v726 = vsel %vm723, 1, 0
        %vm727 = vcmp.eq.s32.totalorder %v724, 1
        %vm728 = vcmp.eq.s32.totalorder %v725, 1
        %vm729 = vcmp.eq.s32.totalorder %v726, 1
        %v730 = vsel %vm727, %v708, 0.0
        %v731 = vsel %vm728, %v709, 0.0
        %v732 = vsel %vm729, %v710, 0.0
        %v733 = vpack.c.bf16 %v731, %v730
        %v734 = vpack.c.bf16 %v732, %v732
        %v736 = vshrl.u32 %v733, 16
        %v738 = vshll.u32 %v733, 16
        %v740 = vrot.slane %v738, 1
        %v741 = vor.u32 %v736, %v740
        %v743 = vshll.u32 %v734, 16
        %v745 = vrot.slane %v743, 1
        %v746 = vsel %vm475, %v741, %v745
        %v747 = vshrl.u32 %v734, 16
        %v749 = vor.u32 %v747, %v745
        %v750 = vld [vmem:[#allocation9] sm:$0xf]
        %v751 = vld [vmem:[#allocation9 + $0x4] sm:$0xf]
        %v752 = vld [vmem:[#allocation9 + $0x8] sm:$0xf]
        %v753 = vld [vmem:[#allocation9 + $0xc] sm:$0xf]
        %v754 = vld [vmem:[#allocation9 + $0x10] sm:$0xf]
        %v755 = vld [vmem:[#allocation9 + $0x14] sm:$0xf]
        %v756 = vld [vmem:[#allocation9 + $0x18] sm:$0xf]
        %v757 = vld [vmem:[#allocation9 + $0x1c] sm:$0xf]
        %v758 = vld [vmem:[#allocation9 + $0x20] sm:$0xf]
        %v759 = vld [vmem:[#allocation9 + $0x24] sm:$0xf]
        %v760 = vld [vmem:[#allocation9 + $0x28] sm:$0xf]
        %v761 = vld [vmem:[#allocation9 + $0x2c] sm:$0xf]
        %v762 = vld [vmem:[#allocation9 + $0x30] sm:$0xf]
        %v763 = vld [vmem:[#allocation9 + $0x34] sm:$0xf]
        %v764 = vld [vmem:[#allocation9 + $0x38] sm:$0xf]
        %v765 = vld [vmem:[#allocation9 + $0x3c] sm:$0xf]
        %v766 = vld [vmem:[#allocation9 + $0x40] sm:$0xf]
        %v767 = vld [vmem:[#allocation9 + $0x44] sm:$0xf]
        %v768 = vld [vmem:[#allocation9 + $0x48] sm:$0xf]
        %v769 = vld [vmem:[#allocation9 + $0x4c] sm:$0xf]
        %v770 = vld [vmem:[#allocation9 + $0x50] sm:$0xf]
        %v771 = vld [vmem:[#allocation9 + $0x54] sm:$0xf]
        %v772 = vld [vmem:[#allocation9 + $0x58] sm:$0xf]
        %v773 = vld [vmem:[#allocation9 + $0x5c] sm:$0xf]
        %v774 = vld [vmem:[#allocation9 + $0x60] sm:$0xf]
        %v775 = vld [vmem:[#allocation9 + $0x64] sm:$0xf]
        %v776 = vld [vmem:[#allocation9 + $0x68] sm:$0xf]
        %v777 = vld [vmem:[#allocation9 + $0x6c] sm:$0xf]
        %v778 = vld [vmem:[#allocation9 + $0x70] sm:$0xf]
        %v779 = vld [vmem:[#allocation9 + $0x74] sm:$0xf]
        %v780 = vld [vmem:[#allocation9 + $0x78] sm:$0xf]
        %v781 = vld [vmem:[#allocation9 + $0x7c] sm:$0xf]
        %v782 = vld [vmem:[%s5] sm:$0x1]
        %v784 = vlaneseq
        %v785 = vshrl.u32 %v784, 7
        %v786 = vsub.s32 0, %v785
        %v787 = vrot.slane %v782, %v786
        %v789 = vrot.slane %v736, 3
        %v790 = vrot.slane %v738, 4
        %v791 = vor.u32 %v789, %v790
        %v792 = vrot.slane %v747, 3
        %v793 = vrot.slane %v743, 4
        %v794 = vor.u32 %v792, %v793
        %v795 = vsel %vm530, %v791, %v794
        %v797 = vshrl.u32 %v746, 16
        %v799 = vrot.slane %v797, 3
        %v800 = vshll.u32 %v746, 16
        %v802 = vrot.slane %v800, 4
        %v803 = vor.u32 %v799, %v802
        %v805 = vshrl.u32 %v749, 16
        %v807 = vrot.slane %v805, 3
        %v808 = vshll.u32 %v749, 16
        %v810 = vrot.slane %v808, 4
        %v811 = vor.u32 %v807, %v810
        %v812 = vsel %vm530, %v803, %v811
        %v847 = vunpack.c.l.b16 %v750
        %v848 = vunpack.c.l.b16 %v751
        %v849 = vunpack.c.l.b16 %v752
        %v850 = vunpack.c.l.b16 %v753
        %v851 = vunpack.c.l.b16 %v754
        %v852 = vunpack.c.l.b16 %v755
        %v853 = vunpack.c.l.b16 %v756
        %v854 = vunpack.c.l.b16 %v757
        %v855 = vunpack.c.l.b16 %v758
        %v856 = vunpack.c.l.b16 %v759
        %v857 = vunpack.c.l.b16 %v760
        %v858 = vunpack.c.l.b16 %v761
        %v859 = vunpack.c.l.b16 %v762
        %v860 = vunpack.c.l.b16 %v763
        %v861 = vunpack.c.l.b16 %v764
        %v862 = vunpack.c.l.b16 %v765
        %v863 = vunpack.c.l.b16 %v766
        %v864 = vunpack.c.l.b16 %v767
        %v865 = vunpack.c.l.b16 %v768
        %v866 = vunpack.c.l.b16 %v769
        %v867 = vunpack.c.l.b16 %v770
        %v868 = vunpack.c.l.b16 %v771
        %v869 = vunpack.c.l.b16 %v772
        %v870 = vunpack.c.l.b16 %v773
        %v871 = vunpack.c.l.b16 %v774
        %v872 = vunpack.c.l.b16 %v775
        %v873 = vunpack.c.l.b16 %v776
        %v874 = vunpack.c.l.b16 %v777
        %v875 = vunpack.c.l.b16 %v778
        %v876 = vunpack.c.l.b16 %v779
        %v877 = vunpack.c.l.b16 %v780
        %v878 = vunpack.c.l.b16 %v781
        %v879 = vpack.c.b16 %v848, %v847
        %v880 = vpack.c.b16 %v850, %v849
        %v881 = vpack.c.b16 %v852, %v851
        %v882 = vpack.c.b16 %v854, %v853
        %v883 = vpack.c.b16 %v856, %v855
        %v884 = vpack.c.b16 %v858, %v857
        %v885 = vpack.c.b16 %v860, %v859
        %v886 = vpack.c.b16 %v862, %v861
        %v887 = vpack.c.b16 %v864, %v863
        %v888 = vpack.c.b16 %v866, %v865
        %v889 = vpack.c.b16 %v868, %v867
        %v890 = vpack.c.b16 %v870, %v869
        %v891 = vpack.c.b16 %v872, %v871
        %v892 = vpack.c.b16 %v874, %v873
        %v893 = vpack.c.b16 %v876, %v875
        %v894 = vpack.c.b16 %v878, %v877
        %911 = vmatprep.subr.bf16.mxu0 0
        %912 = vmatpush1.bf16.msra.mxu0 %v879
        %913 = vmatprep.subr.bf16.mxu0 0
        %914 = vmatpush1.bf16.msra.mxu0 %v880
        %915 = vmatprep.subr.bf16.mxu0 0
        %916 = vmatpush1.bf16.msra.mxu0 %v881
        %917 = vmatprep.subr.bf16.mxu0 0
        %918 = vmatpush1.bf16.msra.mxu0 %v882
        %919 = vmatprep.subr.bf16.mxu0 0
        %920 = vmatpush1.bf16.msra.mxu0 %v883
        %921 = vmatprep.subr.bf16.mxu0 0
        %922 = vmatpush1.bf16.msra.mxu0 %v884
        %923 = vmatprep.subr.bf16.mxu0 0
        %924 = vmatpush1.bf16.msra.mxu0 %v885
        %925 = vmatprep.subr.bf16.mxu0 0
        %926 = vmatpush1.bf16.msra.mxu0 %v886
        %927 = vmatprep.subr.bf16.mxu0 0
        %928 = vmatpush1.bf16.msra.mxu0 %v887
        %929 = vmatprep.subr.bf16.mxu0 0
        %930 = vmatpush1.bf16.msra.mxu0 %v888
        %931 = vmatprep.subr.bf16.mxu0 0
        %932 = vmatpush1.bf16.msra.mxu0 %v889
        %933 = vmatprep.subr.bf16.mxu0 0
        %934 = vmatpush1.bf16.msra.mxu0 %v890
        %935 = vmatprep.subr.bf16.mxu0 0
        %936 = vmatpush1.bf16.msra.mxu0 %v891
        %937 = vmatprep.subr.bf16.mxu0 0
        %938 = vmatpush1.bf16.msra.mxu0 %v892
        %939 = vmatprep.subr.bf16.mxu0 0
        %940 = vmatpush1.bf16.msra.mxu0 %v893
        %941 = vmatprep.subr.bf16.mxu0 0
        %942 = vmatpush1.bf16.msra.mxu0 %v894
        %943 = vmatprep.mubr.bf16.mxu0 %v812
        %944 = vmatmul.mubr.bf16.gmra.mrb[0].mxu0 %v795
        %v945 = vpop.f32.mrb[0].mxu0
        %v946 = vadd.f32 %v787, %v945
        %v947 = vpop.f32.mrb[0].mxu0
        %v948 = vpop.f32.mrb[0].mxu0
        %v949 = vadd.f32 %v787, %v948
        %v950 = vpop.f32.mrb[0].mxu0
        %951 = vdwg.mxu0
        %v952 = vmax.f32 %v946, 0.0
        %v953 = vmax.f32 %v949, 0.0
        %v954 = vld [vmem:[%s379] sm:$0xf]
        %v955 = vld [vmem:[%s379 + $0x4] sm:$0xf]
        %v956 = vld [vmem:[#allocation11] sm:$0xf]
        %v957 = vld [vmem:[#allocation11 + $0x4] sm:$0xf]
        %v958 = vld [vmem:[#allocation11 + $0x8] sm:$0xf]
        %v959 = vld [vmem:[#allocation11 + $0xc] sm:$0xf]
        %v960 = vld [vmem:[#allocation11 + $0x10] sm:$0xf]
        %v961 = vld [vmem:[#allocation11 + $0x14] sm:$0xf]
        %v962 = vld [vmem:[#allocation11 + $0x18] sm:$0xf]
        %v963 = vld [vmem:[#allocation11 + $0x1c] sm:$0xf]
        %v964 = vld [vmem:[#allocation11 + $0x20] sm:$0xf]
        %v965 = vld [vmem:[#allocation11 + $0x24] sm:$0xf]
        %v966 = vld [vmem:[#allocation11 + $0x28] sm:$0xf]
        %v967 = vld [vmem:[#allocation11 + $0x2c] sm:$0xf]
        %v968 = vld [vmem:[#allocation11 + $0x30] sm:$0xf]
        %v969 = vld [vmem:[#allocation11 + $0x34] sm:$0xf]
        %v970 = vld [vmem:[#allocation11 + $0x38] sm:$0xf]
        %v971 = vld [vmem:[#allocation11 + $0x3c] sm:$0xf]
        %v972 = vld [vmem:[%s7] sm:$0x1]
        %v974 = vlaneseq
        %v975 = vshrl.u32 %v974, 7
        %v976 = vsub.s32 0, %v975
        %v977 = vrot.slane %v972, %v976
        %v981 = vunpack.c.l.b16 %v954
        %v982 = vunpack.c.l.b16 %v955
        %v983 = vpack.c.b16 %v982, %v981
        %v1001 = vunpack.c.l.b16 %v956
        %v1002 = vunpack.c.l.b16 %v957
        %v1003 = vunpack.c.l.b16 %v958
        %v1004 = vunpack.c.l.b16 %v959
        %v1005 = vunpack.c.l.b16 %v960
        %v1006 = vunpack.c.l.b16 %v961
        %v1007 = vunpack.c.l.b16 %v962
        %v1008 = vunpack.c.l.b16 %v963
        %v1009 = vunpack.c.l.b16 %v964
        %v1010 = vunpack.c.l.b16 %v965
        %v1011 = vunpack.c.l.b16 %v966
        %v1012 = vunpack.c.l.b16 %v967
        %v1013 = vunpack.c.l.b16 %v968
        %v1014 = vunpack.c.l.b16 %v969
        %v1015 = vunpack.c.l.b16 %v970
        %v1016 = vunpack.c.l.b16 %v971
        %v1017 = vpack.c.b16 %v1002, %v1001
        %v1018 = vpack.c.b16 %v1004, %v1003
        %v1019 = vpack.c.b16 %v1006, %v1005
        %v1020 = vpack.c.b16 %v1008, %v1007
        %v1021 = vpack.c.b16 %v1010, %v1009
        %v1022 = vpack.c.b16 %v1012, %v1011
        %v1023 = vpack.c.b16 %v1014, %v1013
        %v1024 = vpack.c.b16 %v1016, %v1015
        %1033 = vmatprep.subr.bf16.mxu0 0
        %1034 = vmatpush1.bf16.msra.mxu0 %v1017
        %1035 = vmatprep.subr.bf16.mxu0 0
        %1036 = vmatpush1.bf16.msra.mxu0 %v1018
        %1037 = vmatprep.subr.bf16.mxu0 0
        %1038 = vmatpush1.bf16.msra.mxu0 %v1019
        %1039 = vmatprep.subr.bf16.mxu0 0
        %1040 = vmatpush1.bf16.msra.mxu0 %v1020
        %1041 = vmatprep.subr.bf16.mxu0 0
        %1042 = vmatpush1.bf16.msra.mxu0 %v1021
        %1043 = vmatprep.subr.bf16.mxu0 0
        %1044 = vmatpush1.bf16.msra.mxu0 %v1022
        %1045 = vmatprep.subr.bf16.mxu0 0
        %1046 = vmatpush1.bf16.msra.mxu0 %v1023
        %1047 = vmatprep.subr.bf16.mxu0 0
        %1048 = vmatpush1.bf16.msra.mxu0 %v1024
        %1049 = vmatprep.subr.bf16.mxu0 0
        %1050 = vmatpush1.bf16.msra.mxu0 0
        %1051 = vmatprep.subr.bf16.mxu0 0
        %1052 = vmatpush1.bf16.msra.mxu0 0
        %1053 = vmatprep.subr.bf16.mxu0 0
        %1054 = vmatpush1.bf16.msra.mxu0 0
        %1055 = vmatprep.subr.bf16.mxu0 0
        %1056 = vmatpush1.bf16.msra.mxu0 0
        %1057 = vmatprep.subr.bf16.mxu0 0
        %1058 = vmatpush1.bf16.msra.mxu0 0
        %1059 = vmatprep.subr.bf16.mxu0 0
        %1060 = vmatpush1.bf16.msra.mxu0 0
        %1061 = vmatprep.subr.bf16.mxu0 0
        %1062 = vmatpush1.bf16.msra.mxu0 0
        %1063 = vmatprep.subr.bf16.mxu0 0
        %1064 = vmatpush1.bf16.msra.mxu0 0
        %1065 = vmatprep.mubr.bf16.mxu0 0
        %1066 = vmatmul.mubr.bf16.gmra.mrb[0].mxu0 %v983
        %v1067 = vpop.f32.mrb[0].mxu0
        %v1068 = vadd.f32 %v977, %v1067
        %v1069 = vpop.f32.mrb[0].mxu0
        %v1070 = vpop.f32.mrb[0].mxu0
        %v1071 = vadd.f32 %v977, %v1070
        %v1072 = vpop.f32.mrb[0].mxu0
        %1073 = vdwg.mxu0
        %v1074 = vadd.f32 %v952, %v1068
        %v1075 = vadd.f32 %v953, %v1071
        %v1076 = vmax.f32 %v1074, 0.0
        %v1077 = vmax.f32 %v1075, 0.0
        %v1078 = vpack.c.bf16 %v1077, %v1076
        %v1080 = vunpack.c.l.b16 %v1078
        %v1081 = vunpack.c.h.b16 %v1078
        %v1082 = vpack.c.b16 %v1080, %v1080
        %v1083 = vpack.c.b16 %v1081, %v1081
        %1086 = vst [vmem:[%s437] sm:$0xf] %v1082
        %1087 = vst [vmem:[%s437 + $0x4] sm:$0xf] %v1083
        %s1088 = sand.u32 %s239, 1
        %s1089 = scalar_lea.sflag [#allocation5], %s1088
        %s1090 = sand.u32 %s239, 1
        %s1091 = smul.addr %s1090, 8
        %s1092 = scalar_lea.vmem [#allocation12], %s1091
        // Predicated region
        $region81: #{tpu_custom_call.1} parent=51 // pred_check
          %p1093 = pneg %p249
        $region82: #{tpu_custom_call.1} parent=51 // pred_check_branch
          %1095 = sbr.rel (%p1093) target = $region84
        $region83: #{tpu_custom_call.1} parent=51 // pred_region
          %s1096 = smul.u32 2, %s34
          %s1098 = ssub.s32 128, 128
          %1099 = vsyncadd %s1089, %s1098
          %s1100 = smul.addr %s33, 2
          %s1101 = sadd.s32 %s1096, %s1100
          %s1102 = smul.addr %s1101, 64
          %s1103 = scalar_lea.hbm %s8, %s1102
          %s1104 = sshll.u32 %s1092, 4
          %s1105 = int_to_ptr.vmem [resolvable:$true] %s1104
          %1110 = dma.vmem_to_hbm [thread:$0]  %s1105, 128, %s1103, %s1089, 64, 64, 4
        $region84: #{tpu_custom_call.1} parent=51 // pred_fallthru
          _
      $region52: #{tpu_custom_call.1} parent=5 // pred_fallthru
        _
      %p1111 = scmp.le.s32.totalorder 2, %s24
      // Predicated region
      $region85: #{tpu_custom_call.1} parent=5 // pred_check
        %p1112 = pneg %p1111
      $region86: #{tpu_custom_call.1} parent=5 // pred_check_branch
        %1114 = sbr.rel (%p1112) target = $region88
      $region87: #{tpu_custom_call.1} parent=5 // pred_region
        %s1115 = ssub.s32 %s24, 2
        // Predicated region
        $region89: #{tpu_custom_call.1} parent=87 // pred_check
          %p1116 = pneg %p255
        $region90: #{tpu_custom_call.1} parent=87 // pred_check_branch
          %1118 = sbr.rel (%p1116) target = $region92
        $region91: #{tpu_custom_call.1} parent=87 // pred_region
          %s1119 = sand.u32 %s240, 1
          %s1120 = scalar_lea.sflag [#allocation5], %s1119
          %s1121 = sand.u32 %s240, 1
          %s1122 = smul.addr %s1121, 8
          %s1123 = scalar_lea.vmem [#allocation12], %s1122
          %1124 = dma.done %s1120, 128
        $region92: #{tpu_custom_call.1} parent=87 // pred_fallthru
          _
      $region88: #{tpu_custom_call.1} parent=5 // pred_fallthru
        _
    $region6: #{tpu_custom_call.1} parent=1 // loop_footer
      %s28 = sadd.s32 1, %s24
    $region7: #{tpu_custom_call.1} parent=1 // loop_footer_branch
      %23 = sbr.rel target = $region3
    $region8: #{tpu_custom_call.1} parent=1 // loop_exit
      _
    %1125 = vsyncpa [#allocation4], 1
    %s1126 = scalar_lea.sflag [#allocation4], 1
    %1127 = vsyncpa %s1126, 1
    %1128 = vsyncpa [#allocation7], 1
    %s1129 = scalar_lea.sflag [#allocation7], 1
    %1130 = vsyncpa %s1129, 1
    %1131 = vsyncpa [#allocation10], 1
    %1132 = vsyncpa [#allocation5], 1
    %s1133 = scalar_lea.sflag [#allocation5], 1
    %1134 = vsyncpa %s1133, 1

</llo_original>
